<compile_context>
chip_gen: v7x
topology: tpu7x:2x2x1
jax: 0.10.0
libtpu: 0.0.40
codegen_flags: <defaults>
</compile_context>

<pallas_src>
import jax
import jax.numpy as jnp
import numpy as np
from jax.experimental import pallas as pl
from jax.experimental.pallas import tpu as pltpu

L_IN = 64          # input length
L_OUT = 259        # final output length
N_PHASE_COLS = 65  # valid columns per phase row (phase r covers o = 4n + r)


def _model_kernel(xs_ref, coef_ref, out_ref):
    xs = xs_ref[...]            # (3, 128): rows hold x[n-1], x[n], x[n+1] at lane n
    c = coef_ref[...]           # (8, 4): rows 0..3 = [A_r, B_r, C_r, bias_r] (scaled by 1/6)
    y = (c[:, 0:1] * xs[0:1, :]
         + c[:, 1:2] * xs[1:2, :]
         + c[:, 2:3] * xs[2:3, :]
         + c[:, 3:4])
    out_ref[...] = jnp.clip(y, 0.0, 1.0)


def model_forward(x, w1, b1, w2, b2):
    # x: (1, 1, 64) NCL, torch-style.  Params in torch ConvTranspose1d layout:
    # w1: (1, 9, 3), b1: (9,), w2: (9, 1, 3), b2: (1,)
    xf = x.reshape(-1).astype(jnp.float32)                 # (64,)
    xm1 = jnp.pad(xf, (1, 128 - L_IN - 1))                 # lane n -> x[n-1]
    x0 = jnp.pad(xf, (0, 128 - L_IN))                      # lane n -> x[n]
    xp1 = jnp.pad(xf[1:], (0, 128 - L_IN + 1))             # lane n -> x[n+1]
    xs = jnp.stack([xm1, x0, xp1], axis=0)                 # (3, 128) packed input slab

    # ---- compose the two linear transposed convs into per-phase coefficients ----
    # conv1: y1[c, 2m]   = b1 + w1[c,0]*x[m] + w1[c,2]*x[m-1]
    #        y1[c, 2m+1] = b1 + w1[c,1]*x[m]
    # conv2 (stride 2, pad 1) phase decomposition over o = 4n + r yields a
    # 3-tap affine map from x[n-1], x[n], x[n+1] per phase r.
    w1k = w1[0]                 # (9, 3)  w1[c_out, k]
    w2k = w2[:, 0, :]           # (9, 3)  w2[c_in, k]
    w10, w11, w12 = w1k[:, 0], w1k[:, 1], w1k[:, 2]
    w20, w21, w22 = w2k[:, 0], w2k[:, 1], w2k[:, 2]
    b2s = b2[0]

    bias_e = b2s + jnp.dot(w21, b1) + 1.0                  # phases 0 and 2 (+1 folded in)
    bias_o = b2s + jnp.dot(w20 + w22, b1) + 1.0            # phases 1 and 3
    a0 = jnp.dot(w21, w12)                                 # r=0: coeff of x[n-1]
    b0 = jnp.dot(w21, w10)                                 # r=0: coeff of x[n]
    a1 = jnp.dot(w22, w12)                                 # r=1: coeff of x[n-1]
    b1c = jnp.dot(w20, w11) + jnp.dot(w22, w10)            # r=1: coeff of x[n]
    b2c = jnp.dot(w21, w11)                                # r=2: coeff of x[n]
    b3c = jnp.dot(w20, w12) + jnp.dot(w22, w11)            # r=3: coeff of x[n]
    c3c = jnp.dot(w20, w10)                                # r=3: coeff of x[n+1]
    zero = jnp.zeros_like(a0)

    coef4 = jnp.stack([
        jnp.stack([a0, b0, zero, bias_e]),
        jnp.stack([a1, b1c, zero, bias_o]),
        jnp.stack([zero, b2c, zero, bias_e]),
        jnp.stack([zero, b3c, c3c, bias_o]),
    ]) * (1.0 / 6.0)                                       # fold the final /6
    coef = jnp.pad(coef4, ((0, 4), (0, 0)))                # (8, 4); rows 4..7 unused

    vmem = pl.BlockSpec(memory_space=pltpu.MemorySpace.VMEM)
    out = pl.pallas_call(
        _model_kernel,
        out_shape=jax.ShapeDtypeStruct((8, 128), jnp.float32),
        in_specs=[vmem, vmem],
        out_specs=vmem,
    )(xs, coef)

    # out[r, n] holds final output position o = 4n + r; interleave and truncate.
    y = jnp.transpose(out[0:4, 0:N_PHASE_COLS]).reshape(-1)[:L_OUT]
    return y.reshape(1, 1, L_OUT)


def _conv_transpose1d_ref(x, w, b, stride, padding, output_padding):
    # x: (C_in, L), w: (C_in, C_out, K), b: (C_out,)
    C_in, L = x.shape
    _, C_out, K = w.shape
    L_out = (L - 1) * stride - 2 * padding + K + output_padding
    y = np.tile(np.asarray(b, np.float32)[:, None], (1, L_out))
    for ci in range(C_in):
        for i in range(L):
            for k in range(K):
                o = i * stride - padding + k
                if 0 <= o < L_out:
                    y[:, o] += x[ci, i] * w[ci, :, k]
    return y


if __name__ == "__main__":
    key = jax.random.PRNGKey(0)
    k1, k2, k3, k4, k5 = jax.random.split(key, 5)

    # Deterministic parameter init (torch ConvTranspose1d weight layout (C_in, C_out, K)).
    bound1 = 1.0 / np.sqrt(1 * 3)
    w1 = jax.random.uniform(k1, (1, 9, 3), jnp.float32, -bound1, bound1)
    b1 = jax.random.uniform(k2, (9,), jnp.float32, -bound1, bound1)
    bound2 = 1.0 / np.sqrt(9 * 3)
    w2 = jax.random.uniform(k3, (9, 1, 3), jnp.float32, -bound2, bound2)
    b2 = jax.random.uniform(k4, (1,), jnp.float32, -bound2, bound2)

    x1 = jax.random.normal(k5, (1, 1, L_IN), jnp.float32)

    out = jax.jit(model_forward)(x1, w1, b1, w2, b2)
    out = jax.block_until_ready(out)

    # Pure-numpy reference check.
    v1 = _conv_transpose1d_ref(np.asarray(x1)[0], np.asarray(w1), np.asarray(b1),
                               stride=2, padding=0, output_padding=1)
    v2 = _conv_transpose1d_ref(v1, np.asarray(w2), np.asarray(b2),
                               stride=2, padding=1, output_padding=0)
    ref = (np.clip(v2 + 1.0, 0.0, 6.0) / 6.0)[None]        # (1, 1, 259)

    assert out.shape == (1, 1, L_OUT) and out.dtype == jnp.float32
    np.testing.assert_allclose(np.asarray(out), ref, rtol=1e-5, atol=1e-5)
    print("KERNEL_OK")
</pallas_src>

<mosaic_0001>
module attributes {stable_mosaic.version = 11 : i64} {
  func.func @_model_kernel(%arg0: memref<3x128xf32, #tpu.memory_space<vmem>>, %arg1: memref<8x4xf32, #tpu.memory_space<vmem>>, %arg2: memref<8x128xf32, #tpu.memory_space<vmem>>) attributes {dimension_semantics = [], scalar_prefetch = 0 : i64, scratch_operands = 0 : i64, tpu.core_type = #tpu.core_type<tc>} {
    %c0 = arith.constant 0 : index
    %c0_0 = arith.constant 0 : index
    %0 = vector.load %arg0[%c0, %c0_0] : memref<3x128xf32, #tpu.memory_space<vmem>>, vector<3x128xf32>
    %c0_1 = arith.constant 0 : index
    %c0_2 = arith.constant 0 : index
    %1 = vector.load %arg1[%c0_1, %c0_2] : memref<8x4xf32, #tpu.memory_space<vmem>>, vector<8x4xf32>
    %2 = vector.extract_strided_slice %1 {offsets = [0, 0], sizes = [8, 1], strides = [1, 1]} : vector<8x4xf32> to vector<8x1xf32>
    %3 = vector.extract_strided_slice %0 {offsets = [0, 0], sizes = [1, 128], strides = [1, 1]} : vector<3x128xf32> to vector<1x128xf32>
    %4 = vector.broadcast %2 : vector<8x1xf32> to vector<8x128xf32>
    %5 = vector.broadcast %3 : vector<1x128xf32> to vector<8x128xf32>
    %6 = arith.mulf %4, %5 : vector<8x128xf32>
    %7 = vector.extract_strided_slice %1 {offsets = [0, 1], sizes = [8, 1], strides = [1, 1]} : vector<8x4xf32> to vector<8x1xf32>
    %8 = vector.extract_strided_slice %0 {offsets = [1, 0], sizes = [1, 128], strides = [1, 1]} : vector<3x128xf32> to vector<1x128xf32>
    %9 = vector.broadcast %7 : vector<8x1xf32> to vector<8x128xf32>
    %10 = vector.broadcast %8 : vector<1x128xf32> to vector<8x128xf32>
    %11 = arith.mulf %9, %10 : vector<8x128xf32>
    %12 = arith.addf %6, %11 : vector<8x128xf32>
    %13 = vector.extract_strided_slice %1 {offsets = [0, 2], sizes = [8, 1], strides = [1, 1]} : vector<8x4xf32> to vector<8x1xf32>
    %14 = vector.extract_strided_slice %0 {offsets = [2, 0], sizes = [1, 128], strides = [1, 1]} : vector<3x128xf32> to vector<1x128xf32>
    %15 = vector.broadcast %13 : vector<8x1xf32> to vector<8x128xf32>
    %16 = vector.broadcast %14 : vector<1x128xf32> to vector<8x128xf32>
    %17 = arith.mulf %15, %16 : vector<8x128xf32>
    %18 = arith.addf %12, %17 : vector<8x128xf32>
    %19 = vector.extract_strided_slice %1 {offsets = [0, 3], sizes = [8, 1], strides = [1, 1]} : vector<8x4xf32> to vector<8x1xf32>
    %20 = vector.broadcast %19 : vector<8x1xf32> to vector<8x128xf32>
    %21 = arith.addf %18, %20 : vector<8x128xf32>
    %cst = arith.constant 0.000000e+00 : f32
    %cst_3 = arith.constant 1.000000e+00 : f32
    %22 = vector.broadcast %cst : f32 to vector<8x128xf32>
    %23 = arith.maximumf %22, %21 : vector<8x128xf32>
    %24 = vector.broadcast %cst_3 : f32 to vector<8x128xf32>
    %25 = arith.minimumf %24, %23 : vector<8x128xf32>
    %c0_4 = arith.constant 0 : index
    %c0_5 = arith.constant 0 : index
    %26 = vector.load %arg2[%c0_4, %c0_5] : memref<8x128xf32, #tpu.memory_space<vmem>>, vector<8x128xf32>
    tpu.vector_store %arg2[%c0_4, %c0_5], %25 {strides = array<i32>} : memref<8x128xf32, #tpu.memory_space<vmem>>, vector<8x128xf32>,
    return
  }
}

</mosaic_0001>

<llo_original>
// kernel: model_forward.1
$region0: #{model_forward.1}
  #allocation0 [shape = 'u32[]', space=smem, size = 0x4, offset = 0x4, fixed_abs, tag = 'smem constant byte address 0x4 - core index']
  #allocation1 [shape = 'u32[144,128]{1,0:T(1,128)}', space=vmem, size = 0x12000, scoped, tag = 'internal scratch']
  %s0 = inlined_call_operand.vmem [shape: f32[3,128], index: 0, kind: input, shape index: {}]
  %s1 = inlined_call_operand.vmem [shape: f32[8,4], index: 1, kind: input, shape index: {}]
  %s2 = inlined_call_operand.vmem [shape: f32[8,128], index: 2, kind: output, shape index: {}]
  %s3 = sld [smem:[#allocation0]]
  $region18: #{model_forward.1} parent=0
    _
  %s5 = ssub.s32 1, %s3
  %s6 = scalar_select 0, %s5, %s3
  // Predicated region
  $region2: #{model_forward.1} parent=0 // pred_check
    _
  $region3: #{model_forward.1} parent=0 // pred_check_branch
    %8 = sbr.rel (0) target = $region5
  $region4: #{model_forward.1} parent=0 // pred_region
    _
  $region5: #{model_forward.1} parent=0 // pred_fallthru
    _
  // Predicated region
  $region6: #{model_forward.1} parent=0 // pred_check
    _
  $region7: #{model_forward.1} parent=0 // pred_check_branch
    %10 = sbr.rel (0) target = $region9
  $region8: #{model_forward.1} parent=0 // pred_region
    _
  $region9: #{model_forward.1} parent=0 // pred_fallthru
    _
  %v11 = vld [vmem:[%s0] sm:$0x7]
  %v12 = vld [vmem:[%s1] sm:$0xff]
  %14 = vset.pattern.permute.xlu0 0
  %15 = vperm.xlu0 %14, %v12
  %v16 = vpop.permute.xlu0 %15
  %v18 = vlaneseq
  %v19 = vshrl.u32 %v18, 7
  %v20 = vsub.s32 0, %v19
  %v21 = vrot.slane %v11, %v20
  %v22 = vmul.f32 %v16, %v21
  %23 = vset.pattern.permute.xlu0 1
  %24 = vperm.xlu0 %23, %v12
  %v25 = vpop.permute.xlu0 %24
  %v27 = vlaneseq
  %v28 = vshrl.u32 %v27, 7
  %v29 = vsub.s32 1, %v28
  %v30 = vrot.slane %v11, %v29
  %v31 = vmul.f32 %v25, %v30
  %v32 = vadd.f32 %v22, %v31
  %33 = vset.pattern.permute.xlu0 2
  %34 = vperm.xlu0 %33, %v12
  %v35 = vpop.permute.xlu0 %34
  %v37 = vlaneseq
  %v38 = vshrl.u32 %v37, 7
  %v39 = vsub.s32 2, %v38
  %v40 = vrot.slane %v11, %v39
  %v41 = vmul.f32 %v35, %v40
  %v42 = vadd.f32 %v32, %v41
  %43 = vset.pattern.permute.xlu0 3
  %44 = vperm.xlu0 %43, %v12
  %v45 = vpop.permute.xlu0 %44
  %v47 = vadd.f32 %v42, %v45
  %v48 = vmax.f32 %v47, 0.0
  %v49 = vmin.f32 %v48, 1.0
  %50 = vst [vmem:[%s2] sm:$0xff] %v49
  // Predicated region
  $region10: #{model_forward.1} parent=0 // pred_check
    _
  $region11: #{model_forward.1} parent=0 // pred_check_branch
    %52 = sbr.rel (0) target = $region13
  $region12: #{model_forward.1} parent=0 // pred_region
    _
  $region13: #{model_forward.1} parent=0 // pred_fallthru
    _
  // Predicated region
  $region14: #{model_forward.1} parent=0 // pred_check
    _
  $region15: #{model_forward.1} parent=0 // pred_check_branch
    %54 = sbr.rel (0) target = $region17
  $region16: #{model_forward.1} parent=0 // pred_region
    _
  $region17: #{model_forward.1} parent=0 // pred_fallthru
    _

</llo_original>
